<compile_context>
chip_gen: v5e
topology: v5e:2x2
jax: 0.10.0
libtpu: 0.0.40
codegen_flags: <defaults>
</compile_context>

<pallas_src>
import functools

import jax
import jax.numpy as jnp
from jax import lax
from jax.experimental import pallas as pl
from jax.experimental.pallas import tpu as pltpu


def _round_up(v, m):
    return (v + m - 1) // m * m


def deconv_layer_forward(x_nchw, weight, bias, *, stride, padding):
    """torch DeConvLayer.forward: ConvTranspose2d(stride, padding) + ReLU.

    x_nchw : (N, C_in, H, W)   weight : (C_in, C_out, K, K)   bias : (C_out,)
    returns (N, C_out, H_out, W_out) f32, H_out = (H-1)*stride - 2*padding + K.
    """
    N, C_in, H, W = x_nchw.shape
    w_cin, C_out, K, K2 = weight.shape
    assert w_cin == C_in and K2 == K
    S, P = int(stride), int(padding)
    H_out = (H - 1) * S - 2 * P + K
    W_out = (W - 1) * S - 2 * P + K
    assert H_out > 0 and W_out > 0
    pad = K - 1 - P                       # dilated-correlation framing (may be < 0)

    # ---- static per-phase metadata (sub-pixel decomposition) ---------------
    # Output position oh with phase r = oh % S only sees kernel taps
    # kh == (pad - r) (mod S); those taps read the *compact* input at row
    # (oh // S) + j + d(r).   Same along W.
    def phase_meta(r):
        k0 = (pad - r) % S
        t = (K - k0 + S - 1) // S if k0 < K else 0
        d = (r + k0 - pad) // S
        return k0, t, d

    meta = [phase_meta(r) for r in range(S)]
    H_ph = -(-H_out // S)                 # output rows computed per phase
    W_ph = -(-W_out // S)                 # valid output cols per phase

    def _pads(ext, full):
        lo = max([0] + [-d for (_, t, d) in meta if t > 0])
        hi = max([0] + [(ext - 1) + (t - 1) + d - (full - 1)
                        for (_, t, d) in meta if t > 0])
        return lo, hi

    L_h, R_h = _pads(H_ph, H)
    L_w, R_w = _pads(W_ph, W)
    R_h += 1                              # flat tap slices may spill one row
    H_pad, W_pad = H + L_h + R_h, W + L_w + R_w
    HWp = H_pad * W_pad
    M_lane = H_ph * W_pad                 # per-phase GEMM lane count (dense)

    Tm = max(1, -(-K // S))
    CCm = Tm * Tm * C_in                  # padded contraction length
    C_out_p = _round_up(C_out, 8)         # sublane-aligned channel count
    n_ph = S * S

    # ---- wrapper-side operand prep (one cheap pass each) -------------------
    # Activation: keep NCHW, cast bf16, pad spatially, flatten (H, W) so each
    # tap becomes a plain lane slice inside the kernel.
    x_p = jnp.pad(x_nchw.astype(jnp.bfloat16),
                  ((0, 0), (0, 0), (L_h, R_h), (L_w, R_w)))
    x_flat = x_p.reshape(N, C_in, HWp)

    # Per-phase weight slabs with all taps folded into the contraction dim:
    # slab[co, (jh*tw + jw)*C_in + ci]  (matches the in-kernel patch order).
    wf = jnp.transpose(jnp.flip(weight, axis=(2, 3)), (2, 3, 0, 1))   # (K,K,Ci,Co)
    w_slabs, phase_info = [], []
    for rh in range(S):
        kh0, th, dh = meta[rh]
        for rw in range(S):
            kw0, tw, dw = meta[rw]
            cc = th * tw * C_in
            if cc > 0:
                sub = wf[kh0::S, kw0::S]                       # (th, tw, Ci, Co)
                sub = jnp.transpose(sub, (3, 0, 1, 2)).reshape(C_out, cc)
            else:                                              # stride > kernel
                sub = jnp.zeros((C_out, 0), weight.dtype)
            sub = jnp.pad(sub, ((0, C_out_p - C_out), (0, CCm - cc)))
            w_slabs.append(sub.astype(jnp.bfloat16))
            phase_info.append((th, tw, dh + L_h, dw + L_w, cc))
    w_all = jnp.stack(w_slabs)                                 # (S*S, Cop, CCm)
    b_col = jnp.pad(bias.astype(jnp.float32),
                    (0, C_out_p - C_out)).reshape(C_out_p, 1)

    # ---- Pallas kernel ------------------------------------------------------
    def kernel(x_ref, w_ref, b_ref, o_ref):
        # x_ref: (1, C_in, HWp)             bf16 (whole padded image, lane-dense)
        # w_ref: (n_ph, C_out_p, CCm)       bf16
        # b_ref: (C_out_p, 1)               f32
        # o_ref: (1, n_ph, C_out_p, M_lane) f32
        for p, (th, tw, ah0, aw0, cc) in enumerate(phase_info):   # static unroll
            if cc > 0:
                slabs = []
                for jh in range(th):
                    for jw in range(tw):
                        off = (ah0 + jh) * W_pad + (aw0 + jw)
                        slabs.append(x_ref[0, :, off:off + M_lane])   # (Ci, M)
                patch = jnp.concatenate(slabs, axis=0)                # (cc, M)
                # taps folded into the contraction -> one MXU matmul per phase
                acc = jnp.dot(w_ref[p, :, :cc], patch,
                              preferred_element_type=jnp.float32)     # (Cop, M)
            else:
                acc = jnp.zeros((C_out_p, M_lane), jnp.float32)
            acc = acc + b_ref[...]                    # bias, broadcast over M
            o_ref[0, p] = jnp.maximum(acc, 0.0).astype(o_ref.dtype)   # ReLU

    # explicit scoped-VMEM budget derived from the actual block sizes
    bytes_x = C_in * HWp * 2
    bytes_o = n_ph * C_out_p * M_lane * 4
    bytes_w = n_ph * C_out_p * CCm * 2
    bytes_work = 2 * (CCm * M_lane * 2 + C_out_p * M_lane * 4)
    need = 2 * (bytes_x + bytes_o) + bytes_w + bytes_work + (1 << 20)
    vmem_limit = int(min(64 << 20, max(16 << 20, 2 * need)))

    out_k = pl.pallas_call(
        kernel,
        out_shape=jax.ShapeDtypeStruct((N, n_ph, C_out_p, M_lane), jnp.float32),
        grid_spec=pltpu.PrefetchScalarGridSpec(
            num_scalar_prefetch=0,
            grid=(N,),
            in_specs=[
                pl.BlockSpec((1, C_in, HWp), lambda n: (n, 0, 0)),
                pl.BlockSpec((n_ph, C_out_p, CCm), lambda n: (0, 0, 0)),
                pl.BlockSpec((C_out_p, 1), lambda n: (0, 0)),
            ],
            out_specs=pl.BlockSpec((1, n_ph, C_out_p, M_lane),
                                   lambda n: (n, 0, 0, 0)),
        ),
        compiler_params=pltpu.CompilerParams(
            dimension_semantics=("parallel",),
            vmem_limit_bytes=vmem_limit),
    )(x_flat, w_all, b_col)

    # Phase interleave back to NCHW: one XLA transpose pass over the compact
    # output (no C_out padding -> no 16x write amplification).
    out = out_k.reshape(N, S, S, C_out_p, H_ph, W_pad)
    out = jnp.transpose(out, (0, 3, 4, 1, 5, 2))        # (N,Cop,H_ph,S,W_pad,S)
    out = out.reshape(N, C_out_p, H_ph * S, W_pad * S)
    return out[:, :C_out, :H_out, :W_out]


if __name__ == "__main__":
    key = jax.random.PRNGKey(0)
    kx, kw_, kb = jax.random.split(key, 3)

    # DeConvLayer(input_channels=4, output_channels=8, kernel_size=3,
    #             stride=2, padding=1)  -- decoder-style upsampling layer
    N, C_in, H, W = 2, 4, 16, 16
    C_out, K, S, P = 8, 3, 2, 1

    x = jax.random.normal(kx, (N, C_in, H, W), jnp.float32)
    bound = 1.0 / (C_in * K * K) ** 0.5
    weight = jax.random.uniform(kw_, (C_in, C_out, K, K), jnp.float32, -bound, bound)
    bias = jax.random.uniform(kb, (C_out,), jnp.float32, -bound, bound)

    fwd = jax.jit(functools.partial(deconv_layer_forward, stride=S, padding=P))
    out = jax.block_until_ready(fwd(x, weight, bias))

    # Reference: XLA transposed conv (dilated conv with flipped kernel) on the
    # same bf16-quantized operands the kernel feeds to the MXU.
    x_q = x.astype(jnp.bfloat16).astype(jnp.float32)
    w_q = weight.astype(jnp.bfloat16).astype(jnp.float32)
    w_flip = jnp.flip(jnp.transpose(w_q, (1, 0, 2, 3)), axis=(2, 3))   # OIHW
    ref = lax.conv_general_dilated(
        x_q, w_flip, window_strides=(1, 1),
        padding=[(K - 1 - P, K - 1 - P)] * 2,
        lhs_dilation=(S, S),
        dimension_numbers=("NCHW", "OIHW", "NCHW"),
        precision=lax.Precision.HIGHEST)
    ref = jnp.maximum(ref + bias[None, :, None, None], 0.0)

    H_out = (H - 1) * S - 2 * P + K
    W_out = (W - 1) * S - 2 * P + K
    assert out.shape == (N, C_out, H_out, W_out), out.shape
    err = float(jnp.max(jnp.abs(out - ref)))
    assert jnp.allclose(out, ref, atol=2e-3, rtol=2e-3), err
    print("KERNEL_OK")
</pallas_src>

<mosaic_0001>
module attributes {stable_mosaic.version = 11 : i64} {
  func.func @kernel(%arg0: i32, %arg1: memref<1x4x306xbf16, #tpu.memory_space<vmem>>, %arg2: memref<4x8x16xbf16, #tpu.memory_space<vmem>>, %arg3: memref<8x1xf32, #tpu.memory_space<vmem>>, %arg4: memref<1x4x8x272xf32, #tpu.memory_space<vmem>>) attributes {dimension_semantics = [#tpu.dimension_semantics<parallel>], iteration_bounds = array<i64: 2>, scalar_prefetch = 0 : i64, scratch_operands = 0 : i64, tpu.core_type = #tpu.core_type<tc>, window_params = [{transform_indices = @transform_0, window_bounds = array<i64: 1, 4, 306>}, {pipeline_mode = #tpu.pipeline_mode<synchronous>, transform_indices = @transform_1, window_bounds = array<i64: 4, 8, 16>}, {pipeline_mode = #tpu.pipeline_mode<synchronous>, transform_indices = @transform_2, window_bounds = array<i64: 8, 1>}, {transform_indices = @transform_3, window_bounds = array<i64: 1, 4, 8, 272>}]} {
    %c0 = arith.constant 0 : index
    %c0_0 = arith.constant 0 : index
    %c0_1 = arith.constant 0 : index
    %0 = vector.load %arg1[%c0, %c0_0, %c0_1] : memref<1x4x306xbf16, #tpu.memory_space<vmem>>, vector<1x4x272xbf16>
    %1 = vector.shape_cast %0 : vector<1x4x272xbf16> to vector<4x272xbf16>
    %c0_2 = arith.constant 0 : index
    %c0_3 = arith.constant 0 : index
    %c0_4 = arith.constant 0 : index
    %2 = vector.load %arg2[%c0_2, %c0_3, %c0_4] : memref<4x8x16xbf16, #tpu.memory_space<vmem>>, vector<1x8x4xbf16>
    %3 = vector.shape_cast %2 : vector<1x8x4xbf16> to vector<8x4xbf16>
    %cst = arith.constant dense<0.000000e+00> : vector<8x272xf32>
    %4 = tpu.matmul %3, %1, %cst {dimension_numbers = #tpu.dot_dimension_numbers<[1], [0], [0], [1], [0, 0, 1, 1], [], []>} : vector<8x4xbf16>, vector<4x272xbf16>, vector<8x272xf32> -> vector<8x272xf32>
    %c0_5 = arith.constant 0 : index
    %c0_6 = arith.constant 0 : index
    %5 = vector.load %arg3[%c0_5, %c0_6] : memref<8x1xf32, #tpu.memory_space<vmem>>, vector<8x1xf32>
    %6 = vector.broadcast %5 : vector<8x1xf32> to vector<8x272xf32>
    %7 = arith.addf %4, %6 : vector<8x272xf32>
    %cst_7 = arith.constant 0.000000e+00 : f32
    %8 = vector.broadcast %cst_7 : f32 to vector<8x272xf32>
    %9 = arith.maximumf %7, %8 : vector<8x272xf32>
    %c0_8 = arith.constant 0 : index
    %c0_9 = arith.constant 0 : index
    %c0_10 = arith.constant 0 : index
    %c0_11 = arith.constant 0 : index
    %10 = vector.load %arg4[%c0_8, %c0_9, %c0_10, %c0_11] : memref<1x4x8x272xf32, #tpu.memory_space<vmem>>, vector<1x1x8x272xf32>
    %11 = vector.shape_cast %10 : vector<1x1x8x272xf32> to vector<8x272xf32>
    %12 = vector.shape_cast %9 : vector<8x272xf32> to vector<1x1x8x272xf32>
    tpu.vector_store %arg4[%c0_8, %c0_9, %c0_10, %c0_11], %12 {strides = array<i32>} : memref<1x4x8x272xf32, #tpu.memory_space<vmem>>, vector<1x1x8x272xf32>,
    %c0_12 = arith.constant 0 : index
    %c0_13 = arith.constant 0 : index
    %c0_14 = arith.constant 0 : index
    %13 = vector.load %arg1[%c0_12, %c0_13, %c0_14] : memref<1x4x306xbf16, #tpu.memory_space<vmem>>, vector<1x4x272xbf16>
    %14 = vector.shape_cast %13 : vector<1x4x272xbf16> to vector<4x272xbf16>
    %c0_15 = arith.constant 0 : index
    %c0_16 = arith.constant 0 : index
    %c1 = arith.constant 1 : index
    %15 = vector.load %arg1[%c0_15, %c0_16, %c1] : memref<1x4x306xbf16, #tpu.memory_space<vmem>>, vector<1x4x272xbf16>
    %16 = vector.shape_cast %15 : vector<1x4x272xbf16> to vector<4x272xbf16>
    %17 = tpu.concatenate %14, %16 in 0 : vector<4x272xbf16>, vector<4x272xbf16> -> vector<8x272xbf16>
    %c1_17 = arith.constant 1 : index
    %c0_18 = arith.constant 0 : index
    %c0_19 = arith.constant 0 : index
    %18 = vector.load %arg2[%c1_17, %c0_18, %c0_19] : memref<4x8x16xbf16, #tpu.memory_space<vmem>>, vector<1x8x8xbf16>
    %19 = vector.shape_cast %18 : vector<1x8x8xbf16> to vector<8x8xbf16>
    %cst_20 = arith.constant dense<0.000000e+00> : vector<8x272xf32>
    %20 = tpu.matmul %19, %17, %cst_20 {dimension_numbers = #tpu.dot_dimension_numbers<[1], [0], [0], [1], [0, 0, 1, 1], [], []>} : vector<8x8xbf16>, vector<8x272xbf16>, vector<8x272xf32> -> vector<8x272xf32>
    %c0_21 = arith.constant 0 : index
    %c0_22 = arith.constant 0 : index
    %21 = vector.load %arg3[%c0_21, %c0_22] : memref<8x1xf32, #tpu.memory_space<vmem>>, vector<8x1xf32>
    %22 = vector.broadcast %21 : vector<8x1xf32> to vector<8x272xf32>
    %23 = arith.addf %20, %22 : vector<8x272xf32>
    %cst_23 = arith.constant 0.000000e+00 : f32
    %24 = vector.broadcast %cst_23 : f32 to vector<8x272xf32>
    %25 = arith.maximumf %23, %24 : vector<8x272xf32>
    %c0_24 = arith.constant 0 : index
    %c1_25 = arith.constant 1 : index
    %c0_26 = arith.constant 0 : index
    %c0_27 = arith.constant 0 : index
    %26 = vector.load %arg4[%c0_24, %c1_25, %c0_26, %c0_27] : memref<1x4x8x272xf32, #tpu.memory_space<vmem>>, vector<1x1x8x272xf32>
    %27 = vector.shape_cast %26 : vector<1x1x8x272xf32> to vector<8x272xf32>
    %28 = vector.shape_cast %25 : vector<8x272xf32> to vector<1x1x8x272xf32>
    tpu.vector_store %arg4[%c0_24, %c1_25, %c0_26, %c0_27], %28 {strides = array<i32>} : memref<1x4x8x272xf32, #tpu.memory_space<vmem>>, vector<1x1x8x272xf32>,
    %c0_28 = arith.constant 0 : index
    %c0_29 = arith.constant 0 : index
    %c0_30 = arith.constant 0 : index
    %29 = vector.load %arg1[%c0_28, %c0_29, %c0_30] : memref<1x4x306xbf16, #tpu.memory_space<vmem>>, vector<1x4x272xbf16>
    %30 = vector.shape_cast %29 : vector<1x4x272xbf16> to vector<4x272xbf16>
    %c0_31 = arith.constant 0 : index
    %c0_32 = arith.constant 0 : index
    %c17 = arith.constant 17 : index
    %31 = vector.load %arg1[%c0_31, %c0_32, %c17] : memref<1x4x306xbf16, #tpu.memory_space<vmem>>, vector<1x4x272xbf16>
    %32 = vector.shape_cast %31 : vector<1x4x272xbf16> to vector<4x272xbf16>
    %33 = tpu.concatenate %30, %32 in 0 : vector<4x272xbf16>, vector<4x272xbf16> -> vector<8x272xbf16>
    %c2 = arith.constant 2 : index
    %c0_33 = arith.constant 0 : index
    %c0_34 = arith.constant 0 : index
    %34 = vector.load %arg2[%c2, %c0_33, %c0_34] : memref<4x8x16xbf16, #tpu.memory_space<vmem>>, vector<1x8x8xbf16>
    %35 = vector.shape_cast %34 : vector<1x8x8xbf16> to vector<8x8xbf16>
    %cst_35 = arith.constant dense<0.000000e+00> : vector<8x272xf32>
    %36 = tpu.matmul %35, %33, %cst_35 {dimension_numbers = #tpu.dot_dimension_numbers<[1], [0], [0], [1], [0, 0, 1, 1], [], []>} : vector<8x8xbf16>, vector<8x272xbf16>, vector<8x272xf32> -> vector<8x272xf32>
    %c0_36 = arith.constant 0 : index
    %c0_37 = arith.constant 0 : index
    %37 = vector.load %arg3[%c0_36, %c0_37] : memref<8x1xf32, #tpu.memory_space<vmem>>, vector<8x1xf32>
    %38 = vector.broadcast %37 : vector<8x1xf32> to vector<8x272xf32>
    %39 = arith.addf %36, %38 : vector<8x272xf32>
    %cst_38 = arith.constant 0.000000e+00 : f32
    %40 = vector.broadcast %cst_38 : f32 to vector<8x272xf32>
    %41 = arith.maximumf %39, %40 : vector<8x272xf32>
    %c0_39 = arith.constant 0 : index
    %c2_40 = arith.constant 2 : index
    %c0_41 = arith.constant 0 : index
    %c0_42 = arith.constant 0 : index
    %42 = vector.load %arg4[%c0_39, %c2_40, %c0_41, %c0_42] : memref<1x4x8x272xf32, #tpu.memory_space<vmem>>, vector<1x1x8x272xf32>
    %43 = vector.shape_cast %42 : vector<1x1x8x272xf32> to vector<8x272xf32>
    %44 = vector.shape_cast %41 : vector<8x272xf32> to vector<1x1x8x272xf32>
    tpu.vector_store %arg4[%c0_39, %c2_40, %c0_41, %c0_42], %44 {strides = array<i32>} : memref<1x4x8x272xf32, #tpu.memory_space<vmem>>, vector<1x1x8x272xf32>,
    %c0_43 = arith.constant 0 : index
    %c0_44 = arith.constant 0 : index
    %c0_45 = arith.constant 0 : index
    %45 = vector.load %arg1[%c0_43, %c0_44, %c0_45] : memref<1x4x306xbf16, #tpu.memory_space<vmem>>, vector<1x4x272xbf16>
    %46 = vector.shape_cast %45 : vector<1x4x272xbf16> to vector<4x272xbf16>
    %c0_46 = arith.constant 0 : index
    %c0_47 = arith.constant 0 : index
    %c1_48 = arith.constant 1 : index
    %47 = vector.load %arg1[%c0_46, %c0_47, %c1_48] : memref<1x4x306xbf16, #tpu.memory_space<vmem>>, vector<1x4x272xbf16>
    %48 = vector.shape_cast %47 : vector<1x4x272xbf16> to vector<4x272xbf16>
    %c0_49 = arith.constant 0 : index
    %c0_50 = arith.constant 0 : index
    %c17_51 = arith.constant 17 : index
    %49 = vector.load %arg1[%c0_49, %c0_50, %c17_51] : memref<1x4x306xbf16, #tpu.memory_space<vmem>>, vector<1x4x272xbf16>
    %50 = vector.shape_cast %49 : vector<1x4x272xbf16> to vector<4x272xbf16>
    %c0_52 = arith.constant 0 : index
    %c0_53 = arith.constant 0 : index
    %c18 = arith.constant 18 : index
    %51 = vector.load %arg1[%c0_52, %c0_53, %c18] : memref<1x4x306xbf16, #tpu.memory_space<vmem>>, vector<1x4x272xbf16>
    %52 = vector.shape_cast %51 : vector<1x4x272xbf16> to vector<4x272xbf16>
    %53 = tpu.concatenate %46, %48, %50, %52 in 0 : vector<4x272xbf16>, vector<4x272xbf16>, vector<4x272xbf16>, vector<4x272xbf16> -> vector<16x272xbf16>
    %c3 = arith.constant 3 : index
    %c0_54 = arith.constant 0 : index
    %c0_55 = arith.constant 0 : index
    %54 = vector.load %arg2[%c3, %c0_54, %c0_55] : memref<4x8x16xbf16, #tpu.memory_space<vmem>>, vector<1x8x16xbf16>
    %55 = vector.shape_cast %54 : vector<1x8x16xbf16> to vector<8x16xbf16>
    %cst_56 = arith.constant dense<0.000000e+00> : vector<8x272xf32>
    %56 = tpu.matmul %55, %53, %cst_56 {dimension_numbers = #tpu.dot_dimension_numbers<[1], [0], [0], [1], [0, 0, 1, 1], [], []>} : vector<8x16xbf16>, vector<16x272xbf16>, vector<8x272xf32> -> vector<8x272xf32>
    %c0_57 = arith.constant 0 : index
    %c0_58 = arith.constant 0 : index
    %57 = vector.load %arg3[%c0_57, %c0_58] : memref<8x1xf32, #tpu.memory_space<vmem>>, vector<8x1xf32>
    %58 = vector.broadcast %57 : vector<8x1xf32> to vector<8x272xf32>
    %59 = arith.addf %56, %58 : vector<8x272xf32>
    %cst_59 = arith.constant 0.000000e+00 : f32
    %60 = vector.broadcast %cst_59 : f32 to vector<8x272xf32>
    %61 = arith.maximumf %59, %60 : vector<8x272xf32>
    %c0_60 = arith.constant 0 : index
    %c3_61 = arith.constant 3 : index
    %c0_62 = arith.constant 0 : index
    %c0_63 = arith.constant 0 : index
    %62 = vector.load %arg4[%c0_60, %c3_61, %c0_62, %c0_63] : memref<1x4x8x272xf32, #tpu.memory_space<vmem>>, vector<1x1x8x272xf32>
    %63 = vector.shape_cast %62 : vector<1x1x8x272xf32> to vector<8x272xf32>
    %64 = vector.shape_cast %61 : vector<8x272xf32> to vector<1x1x8x272xf32>
    tpu.vector_store %arg4[%c0_60, %c3_61, %c0_62, %c0_63], %64 {strides = array<i32>} : memref<1x4x8x272xf32, #tpu.memory_space<vmem>>, vector<1x1x8x272xf32>,
    return
  }
  func.func @transform_0(%arg0: i32) -> (i32, i32, i32) {
    %c0_i32 = arith.constant 0 : i32
    %c0_i32_0 = arith.constant 0 : i32
    %c0_i32_1 = arith.constant 0 : i32
    return %arg0, %c0_i32, %c0_i32_0 : i32, i32, i32
  }
  func.func @transform_1(%arg0: i32) -> (i32, i32, i32) {
    %c0_i32 = arith.constant 0 : i32
    %c0_i32_0 = arith.constant 0 : i32
    %c0_i32_1 = arith.constant 0 : i32
    %c0_i32_2 = arith.constant 0 : i32
    return %c0_i32, %c0_i32_0, %c0_i32_1 : i32, i32, i32
  }
  func.func @transform_2(%arg0: i32) -> (i32, i32) {
    %c0_i32 = arith.constant 0 : i32
    %c0_i32_0 = arith.constant 0 : i32
    %c0_i32_1 = arith.constant 0 : i32
    return %c0_i32, %c0_i32_0 : i32, i32
  }
  func.func @transform_3(%arg0: i32) -> (i32, i32, i32, i32) {
    %c0_i32 = arith.constant 0 : i32
    %c0_i32_0 = arith.constant 0 : i32
    %c0_i32_1 = arith.constant 0 : i32
    %c0_i32_2 = arith.constant 0 : i32
    return %arg0, %c0_i32, %c0_i32_0, %c0_i32_1 : i32, i32, i32, i32
  }
}

</mosaic_0001>

<llo_original>
// kernel: deconv_layer_forward.1
$region0: #{deconv_layer_forward.1}
  #allocation0 [shape = 'u32[]', space=smem, size = 0x4, offset = 0x4, fixed_abs, tag = 'smem constant byte address 0x4 - core index']
  #allocation1 [shape = 'u32[72,128]{1,0:T(1,128)}', space=vmem, size = 0x9000, scoped, tag = 'internal scratch']
  %s0 = inlined_call_operand.vmem [shape: bf16[2,4,306], index: 0, kind: input, shape index: {}]
  %s1 = inlined_call_operand.vmem [shape: bf16[4,8,16], index: 1, kind: input, shape index: {}]
  %s2 = inlined_call_operand.vmem [shape: f32[8,1], index: 2, kind: input, shape index: {}]
  %s3 = inlined_call_operand.vmem [shape: f32[2,4,8,272], index: 3, kind: output, shape index: {}]
  %s4 = sld [smem:[#allocation0]]
  $region45: #{deconv_layer_forward.1} parent=0
    _
  %s6 = ssub.s32 1, %s4
  %s7 = scalar_select 0, %s6, %s4
  loop: start=0, step=1, limit=4
  $region2: #{deconv_layer_forward.1} parent=0 // loop_pre_header
    _
  $region3: #{deconv_layer_forward.1} parent=0 // loop_header
    %s9 = sphi 0, %s13
    %p10 = scmp.ge.s32.totalorder %s9, 4
    %s19 = sphi 0, %s21
    %s22 = sphi 0, %s19
    %s23 = sphi 0, %s22
    %s39 = sphi 0, %s23
    %s43 = sphi 0, %s43
    %s45 = sphi 0, %s43
    %s46 = sphi 0, %s45
    %s60 = sphi 0, %s46
    %s64 = sphi 0, %s64
    %s66 = sphi 0, %s64
    %s67 = sphi 0, %s66
    %s81 = sphi 0, %s67
    %s87 = sphi 0, %s89
    %s90 = sphi 0, %s87
    %s91 = sphi 0, %s90
    %s107 = sphi 0, %s91
  $region4: #{deconv_layer_forward.1} parent=0 // loop_header_branch
    %12 = sbr.rel (%p10) target = $region8
  $region5: #{deconv_layer_forward.1} parent=0 // loop_body
    %s14 = ssub.s32 %s9, 1
    %s15 = ssub.s32 %s9, 2
    %s16 = sadd.s32 %s9, 1
    %s17 = ssub.s32 %s9, %s16
    %p18 = scmp.eq.s32.totalorder %s17, 0
    %s20 = sadd.s32 %s19, 1
    %s21 = scalar_select %p18, %s19, %s20
    %p24 = pneg %p18
    %p25 = scmp.eq.s32.totalorder %s9, 1
    %p26 = por %p24, %p25
    %p27 = scmp.ne.s32.totalorder %s19, %s22
    %p28 = scmp.eq.s32.totalorder %s9, 0
    %p29 = por %p27, %p28
    %p30 = scmp.ne.s32.totalorder %s19, %s22
    %p31 = scmp.eq.s32.totalorder %s14, 1
    %p32 = por %p30, %p31
    %p33 = scmp.ne.s32.totalorder %s22, %s23
    %p34 = scmp.eq.s32.totalorder %s14, 0
    %p35 = por %p33, %p34
    %p36 = scmp.ne.s32.totalorder %s22, %s23
    %p37 = scmp.eq.s32.totalorder %s15, 1
    %p38 = por %p36, %p37
    %p40 = scmp.ne.s32.totalorder %s23, %s39
    %p41 = scmp.eq.s32.totalorder %s15, 0
    %p42 = por %p40, %p41
    %s44 = sadd.s32 %s43, 1
    %p47 = scmp.eq.s32.totalorder %s9, 1
    %p48 = scmp.ne.s32.totalorder %s43, %s45
    %p49 = scmp.eq.s32.totalorder %s9, 0
    %p50 = por %p48, %p49
    %p51 = scmp.ne.s32.totalorder %s43, %s45
    %p52 = scmp.eq.s32.totalorder %s14, 1
    %p53 = por %p51, %p52
    %p54 = scmp.ne.s32.totalorder %s45, %s46
    %p55 = scmp.eq.s32.totalorder %s14, 0
    %p56 = por %p54, %p55
    %p57 = scmp.ne.s32.totalorder %s45, %s46
    %p58 = scmp.eq.s32.totalorder %s15, 1
    %p59 = por %p57, %p58
    %p61 = scmp.ne.s32.totalorder %s46, %s60
    %p62 = scmp.eq.s32.totalorder %s15, 0
    %p63 = por %p61, %p62
    %s65 = sadd.s32 %s64, 1
    %p68 = scmp.eq.s32.totalorder %s9, 1
    %p69 = scmp.ne.s32.totalorder %s64, %s66
    %p70 = scmp.eq.s32.totalorder %s9, 0
    %p71 = por %p69, %p70
    %p72 = scmp.ne.s32.totalorder %s64, %s66
    %p73 = scmp.eq.s32.totalorder %s14, 1
    %p74 = por %p72, %p73
    %p75 = scmp.ne.s32.totalorder %s66, %s67
    %p76 = scmp.eq.s32.totalorder %s14, 0
    %p77 = por %p75, %p76
    %p78 = scmp.ne.s32.totalorder %s66, %s67
    %p79 = scmp.eq.s32.totalorder %s15, 1
    %p80 = por %p78, %p79
    %p82 = scmp.ne.s32.totalorder %s67, %s81
    %p83 = scmp.eq.s32.totalorder %s15, 0
    %p84 = por %p82, %p83
    %s85 = ssub.s32 %s9, %s16
    %p86 = scmp.eq.s32.totalorder %s85, 0
    %s88 = sadd.s32 %s87, 1
    %s89 = scalar_select %p86, %s87, %s88
    %p92 = pneg %p86
    %p93 = scmp.eq.s32.totalorder %s9, 1
    %p94 = por %p92, %p93
    %p95 = scmp.ne.s32.totalorder %s87, %s90
    %p96 = scmp.eq.s32.totalorder %s9, 0
    %p97 = por %p95, %p96
    %p98 = scmp.ne.s32.totalorder %s87, %s90
    %p99 = scmp.eq.s32.totalorder %s14, 1
    %p100 = por %p98, %p99
    %p101 = scmp.ne.s32.totalorder %s90, %s91
    %p102 = scmp.eq.s32.totalorder %s14, 0
    %p103 = por %p101, %p102
    %p104 = scmp.ne.s32.totalorder %s90, %s91
    %p105 = scmp.eq.s32.totalorder %s15, 1
    %p106 = por %p104, %p105
    %p108 = scmp.ne.s32.totalorder %s91, %s107
    %p109 = scmp.eq.s32.totalorder %s15, 0
    %p110 = por %p108, %p109
    %p111 = scmp.le.s32.totalorder 1, %s9
    %p112 = scmp.lt.s32.totalorder %s9, 3
    %p113 = pnand %p111, %p112
    %p114 = pneg %p113
    // Predicated region
    $region9: #{deconv_layer_forward.1} parent=5 // pred_check
      _
    $region10: #{deconv_layer_forward.1} parent=5 // pred_check_branch
      %116 = sbr.rel (%p113) target = $region12
    $region11: #{deconv_layer_forward.1} parent=5 // pred_region
      %s117 = ssub.s32 %s9, 1
      // Predicated region
      $region13: #{deconv_layer_forward.1} parent=11 // pred_check
        %p118 = pneg %p56
      $region14: #{deconv_layer_forward.1} parent=11 // pred_check_branch
        %120 = sbr.rel (%p118) target = $region16
      $region15: #{deconv_layer_forward.1} parent=11 // pred_region
        _
      $region16: #{deconv_layer_forward.1} parent=11 // pred_fallthru
        _
      // Predicated region
      $region17: #{deconv_layer_forward.1} parent=11 // pred_check
        %p121 = pneg %p77
      $region18: #{deconv_layer_forward.1} parent=11 // pred_check_branch
        %123 = sbr.rel (%p121) target = $region20
      $region19: #{deconv_layer_forward.1} parent=11 // pred_region
        _
      $region20: #{deconv_layer_forward.1} parent=11 // pred_fallthru
        _
    $region12: #{deconv_layer_forward.1} parent=5 // pred_fallthru
      _
    %p124 = scmp.lt.s32.totalorder %s9, 2
    // Predicated region
    $region21: #{deconv_layer_forward.1} parent=5 // pred_check
      %p125 = pneg %p124
    $region22: #{deconv_layer_forward.1} parent=5 // pred_check_branch
      %127 = sbr.rel (%p125) target = $region24
    $region23: #{deconv_layer_forward.1} parent=5 // pred_region
      // Predicated region
      $region25: #{deconv_layer_forward.1} parent=23 // pred_check
        %p128 = pneg %p29
      $region26: #{deconv_layer_forward.1} parent=23 // pred_check_branch
        %130 = sbr.rel (%p128) target = $region28
      $region27: #{deconv_layer_forward.1} parent=23 // pred_region
        %p131 = scmp.lt.s32.totalorder %s9, 1
        %s132 = scalar_select %p131, %s9, 1
        %s133 = smul.addr %s132, 3
        %s134 = smul.addr %s133, 2
        %s135 = scalar_lea.vmem %s0, %s134
      $region28: #{deconv_layer_forward.1} parent=23 // pred_fallthru
        _
    $region24: #{deconv_layer_forward.1} parent=5 // pred_fallthru
      _
    %p136 = scmp.le.s32.totalorder 1, %s9
    %p137 = scmp.lt.s32.totalorder %s9, 3
    %p138 = pnand %p136, %p137
    %p139 = pneg %p138
    // Predicated region
    $region29: #{deconv_layer_forward.1} parent=5 // pred_check
      _
    $region30: #{deconv_layer_forward.1} parent=5 // pred_check_branch
      %141 = sbr.rel (%p138) target = $region32
    $region31: #{deconv_layer_forward.1} parent=5 // pred_region
      %s142 = ssub.s32 %s9, 1
      %p143 = scmp.lt.s32.totalorder %s14, 1
      %s144 = scalar_select %p143, %s14, 1
      %s145 = smul.addr %s144, 3
      %s146 = smul.addr %s145, 2
      %s147 = scalar_lea.vmem %s0, %s146
      %p148 = pneg %p35
      %p149 = pneg %p32
      %p150 = pneg %p56
      %p151 = pneg %p53
      %p152 = pneg %p77
      %p153 = pneg %p74
      %p154 = pneg %p103
      %p155 = pneg %p100
      %p156 = scmp.lt.s32.totalorder %s14, 1
      %s157 = scalar_select %p156, %s14, 1
      %s158 = smul.addr %s157, 12
      %s159 = smul.addr %s158, 8
      %s160 = scalar_lea.vmem %s3, %s159
      %p161 = scmp.lt.s32.totalorder %s14, 1
      %s162 = scalar_select %p161, %s14, 1
      %s163 = smul.addr %s162, 3
      %s164 = smul.addr %s163, 2
      %s165 = scalar_lea.vmem %s0, %s164
      %p166 = scmp.lt.s32.totalorder %s14, 1
      %s167 = scalar_select %p166, %s14, 1
      %s168 = smul.addr %s167, 12
      %s169 = smul.addr %s168, 8
      %s170 = scalar_lea.vmem %s3, %s169
      %v172 = vld [vmem:[%s165] sm:$0x3f]
      %v173 = vld [vmem:[%s1] sm:$0xf]
      %v174 = vld [vmem:[%s2] sm:$0xff]
      %176 = vset.pattern.permute.xlu0 0
      %177 = vperm.xlu0 %176, %v174
      %v178 = vpop.permute.xlu0 %177
      %181 = vst [vmem:[#allocation1] ss:$4 sm:$0xff] %v172
      %v182 = vld.sshfl [vmem:[#allocation1] sm:$0xff pattern:$0x73625140]
      %v183 = vld.sshfl [vmem:[#allocation1 + $0x8] sm:$0xff pattern:$0x73625140]
      %v184 = vld.sshfl [vmem:[#allocation1 + $0x10] sm:$0xff pattern:$0x73625140]
      %vm185 = vcmask 31744
      %v187 = vsel %vm185, %v173, 0
      %vm189 = vcmask 1041408
      %v190 = vsel %vm189, %v182, 0
      %v192 = vsel %vm189, %v183, 0
      %v194 = vsel %vm189, %v184, 0
      %196 = vmatpush.bf16.msra.mxu0 0
      %197 = vmatpush.bf16.msra.mxu0 0
      %198 = vmatpush.bf16.msra.mxu0 0
      %199 = vmatpush.bf16.msra.mxu0 0
      %200 = vmatpush.bf16.msra.mxu0 0
      %201 = vmatpush.bf16.msra.mxu0 0
      %202 = vmatpush.bf16.msra.mxu0 0
      %203 = vmatpush.bf16.msra.mxu0 %v190
      %204 = vmatmul.bf16.gmra.mxu0 %v187
      %v205 = vpop.f32.mrf.mxu0
      %v206 = vadd.f32 %v178, %v205
      %v207 = vpop.f32.mrf.mxu0
      %208 = vdwg.mxu0
      %209 = vmatpush.bf16.msra.mxu0 0
      %210 = vmatpush.bf16.msra.mxu0 0
      %211 = vmatpush.bf16.msra.mxu0 0
      %212 = vmatpush.bf16.msra.mxu0 0
      %213 = vmatpush.bf16.msra.mxu0 0
      %214 = vmatpush.bf16.msra.mxu0 0
      %215 = vmatpush.bf16.msra.mxu0 0
      %216 = vmatpush.bf16.msra.mxu0 %v192
      %217 = vmatmul.bf16.gmra.mxu0 %v187
      %v218 = vpop.f32.mrf.mxu0
      %v219 = vadd.f32 %v178, %v218
      %v220 = vpop.f32.mrf.mxu0
      %221 = vdwg.mxu0
      %222 = vmatpush.bf16.msra.mxu0 0
      %223 = vmatpush.bf16.msra.mxu0 0
      %224 = vmatpush.bf16.msra.mxu0 0
      %225 = vmatpush.bf16.msra.mxu0 0
      %226 = vmatpush.bf16.msra.mxu0 0
      %227 = vmatpush.bf16.msra.mxu0 0
      %228 = vmatpush.bf16.msra.mxu0 0
      %229 = vmatpush.bf16.msra.mxu0 %v194
      %230 = vmatmul.bf16.gmra.mxu0 %v187
      %v231 = vpop.f32.mrf.mxu0
      %v232 = vadd.f32 %v178, %v231
      %v233 = vpop.f32.mrf.mxu0
      %234 = vdwg.mxu0
      %v235 = vmax.f32 %v206, 0.0
      %v236 = vmax.f32 %v219, 0.0
      %v237 = vmax.f32 %v232, 0.0
      %238 = vst [vmem:[%s170] sm:$0xff] %v235
      %239 = vst [vmem:[%s170 + $0x8] sm:$0xff] %v236
      %vm240 = vcmask 130048
      %241 = vst.msk [vmem:[%s170 + $0x10] sm:$0xff] %vm240, %v237
      %v242 = vld [vmem:[%s165] sm:$0x3f]
      %244 = vst [vmem:[#allocation1] ss:$4 sm:$0xff] %v242
      %v245 = vld.sshfl [vmem:[#allocation1] sm:$0xff pattern:$0x73625140]
      %v246 = vld.sshfl [vmem:[#allocation1 + $0x8] sm:$0xff pattern:$0x73625140]
      %v247 = vld.sshfl [vmem:[#allocation1 + $0x10] sm:$0xff pattern:$0x73625140]
      %s248 = scalar_lea.vmem [#allocation1], 1
      %249 = vst [vmem:[%s248] ss:$4 sm:$0xff] %v242
      %v250 = vld.sshfl [vmem:[#allocation1] sm:$0xff pattern:$0x73625140]
      %v252 = vld.sshfl [vmem:[#allocation1 + $0x8] sm:$0xff pattern:$0x73625140]
      %v254 = vld.sshfl [vmem:[#allocation1 + $0x10] sm:$0xff pattern:$0x73625140]
      %256 = vrot.lane.b32.xlu0 %v250, 127
      %v257 = vpop.permute.xlu0 %256
      %258 = vrot.lane.b32.xlu0 %v252, 127
      %v259 = vpop.permute.xlu0 %258
      %260 = vrot.lane.b32.xlu0 %v254, 127
      %v261 = vpop.permute.xlu0 %260
      %vm262 = vcmask 1039360
      %v263 = vsel %vm262, %v257, %v259
      %v264 = vsel %vm262, %v259, %v261
      %v266 = vsel %vm189, %v245, %v263
      %v268 = vsel %vm189, %v246, %v264
      %v270 = vsel %vm189, %v247, %v261
      %s271 = scalar_lea.vmem %s1, 4
      %v272 = vld [vmem:[%s271] sm:$0xf]
      %v273 = vld [vmem:[%s2] sm:$0xff]
      %275 = vset.pattern.permute.xlu0 0
      %276 = vperm.xlu0 %275, %v273
      %v277 = vpop.permute.xlu0 %276
      %vm279 = vcmask 64512
      %v281 = vsel %vm279, %v272, 0
      %vm283 = vcmask 1043456
      %v284 = vsel %vm283, %v266, 0
      %v286 = vsel %vm283, %v268, 0
      %v288 = vsel %vm283, %v270, 0
      %290 = vmatpush.bf16.msra.mxu0 0
      %291 = vmatpush.bf16.msra.mxu0 0
      %292 = vmatpush.bf16.msra.mxu0 0
      %293 = vmatpush.bf16.msra.mxu0 0
      %294 = vmatpush.bf16.msra.mxu0 0
      %295 = vmatpush.bf16.msra.mxu0 0
      %296 = vmatpush.bf16.msra.mxu0 0
      %297 = vmatpush.bf16.msra.mxu0 %v284
      %298 = vmatmul.bf16.gmra.mxu0 %v281
      %v299 = vpop.f32.mrf.mxu0
      %v300 = vadd.f32 %v277, %v299
      %v301 = vpop.f32.mrf.mxu0
      %302 = vdwg.mxu0
      %303 = vmatpush.bf16.msra.mxu0 0
      %304 = vmatpush.bf16.msra.mxu0 0
      %305 = vmatpush.bf16.msra.mxu0 0
      %306 = vmatpush.bf16.msra.mxu0 0
      %307 = vmatpush.bf16.msra.mxu0 0
      %308 = vmatpush.bf16.msra.mxu0 0
      %309 = vmatpush.bf16.msra.mxu0 0
      %310 = vmatpush.bf16.msra.mxu0 %v286
      %311 = vmatmul.bf16.gmra.mxu0 %v281
      %v312 = vpop.f32.mrf.mxu0
      %v313 = vadd.f32 %v277, %v312
      %v314 = vpop.f32.mrf.mxu0
      %315 = vdwg.mxu0
      %316 = vmatpush.bf16.msra.mxu0 0
      %317 = vmatpush.bf16.msra.mxu0 0
      %318 = vmatpush.bf16.msra.mxu0 0
      %319 = vmatpush.bf16.msra.mxu0 0
      %320 = vmatpush.bf16.msra.mxu0 0
      %321 = vmatpush.bf16.msra.mxu0 0
      %322 = vmatpush.bf16.msra.mxu0 0
      %323 = vmatpush.bf16.msra.mxu0 %v288
      %324 = vmatmul.bf16.gmra.mxu0 %v281
      %v325 = vpop.f32.mrf.mxu0
      %v326 = vadd.f32 %v277, %v325
      %v327 = vpop.f32.mrf.mxu0
      %328 = vdwg.mxu0
      %v329 = vmax.f32 %v300, 0.0
      %v330 = vmax.f32 %v313, 0.0
      %v331 = vmax.f32 %v326, 0.0
      %s332 = scalar_lea.vmem %s170, 24
      %333 = vst [vmem:[%s332] sm:$0xff] %v329
      %334 = vst [vmem:[%s332 + $0x8] sm:$0xff] %v330
      %335 = vst.msk [vmem:[%s332 + $0x10] sm:$0xff] %vm240, %v331
      %v336 = vld [vmem:[%s165] sm:$0x3f]
      %338 = vst [vmem:[#allocation1] ss:$4 sm:$0xff] %v336
      %v339 = vld.sshfl [vmem:[#allocation1] sm:$0xff pattern:$0x73625140]
      %v340 = vld.sshfl [vmem:[#allocation1 + $0x8] sm:$0xff pattern:$0x73625140]
      %v341 = vld.sshfl [vmem:[#allocation1 + $0x10] sm:$0xff pattern:$0x73625140]
      %s342 = scalar_lea.vmem [#allocation1], 1
      %343 = vst [vmem:[%s342] ss:$4 sm:$0xff] %v336
      %v344 = vld.sshfl [vmem:[#allocation1] sm:$0xff pattern:$0x73625140]
      %v346 = vld.sshfl [vmem:[#allocation1 + $0x8] sm:$0xff pattern:$0x73625140]
      %v348 = vld.sshfl [vmem:[#allocation1 + $0x10] sm:$0xff pattern:$0x73625140]
      %350 = vrot.lane.b32.xlu0 %v344, 111
      %v351 = vpop.permute.xlu0 %350
      %352 = vrot.lane.b32.xlu0 %v346, 111
      %v353 = vpop.permute.xlu0 %352
      %354 = vrot.lane.b32.xlu0 %v348, 111
      %v355 = vpop.permute.xlu0 %354
      %vm356 = vcmask 908288
      %v357 = vsel %vm356, %v351, %v353
      %v358 = vsel %vm356, %v353, %v355
      %v360 = vsel %vm189, %v339, %v357
      %v362 = vsel %vm189, %v340, %v358
      %v364 = vsel %vm189, %v341, %v355
      %s365 = scalar_lea.vmem %s1, 8
      %v366 = vld [vmem:[%s365] sm:$0xf]
      %v367 = vld [vmem:[%s2] sm:$0xff]
      %369 = vset.pattern.permute.xlu0 0
      %370 = vperm.xlu0 %369, %v367
      %v371 = vpop.permute.xlu0 %370
      %v374 = vsel %vm279, %v366, 0
      %v376 = vsel %vm283, %v360, 0
      %v378 = vsel %vm283, %v362, 0
      %v380 = vsel %vm283, %v364, 0
      %382 = vmatpush.bf16.msra.mxu0 0
      %383 = vmatpush.bf16.msra.mxu0 0
      %384 = vmatpush.bf16.msra.mxu0 0
      %385 = vmatpush.bf16.msra.mxu0 0
      %386 = vmatpush.bf16.msra.mxu0 0
      %387 = vmatpush.bf16.msra.mxu0 0
      %388 = vmatpush.bf16.msra.mxu0 0
      %389 = vmatpush.bf16.msra.mxu0 %v376
      %390 = vmatmul.bf16.gmra.mxu0 %v374
      %v391 = vpop.f32.mrf.mxu0
      %v392 = vadd.f32 %v371, %v391
      %v393 = vpop.f32.mrf.mxu0
      %394 = vdwg.mxu0
      %395 = vmatpush.bf16.msra.mxu0 0
      %396 = vmatpush.bf16.msra.mxu0 0
      %397 = vmatpush.bf16.msra.mxu0 0
      %398 = vmatpush.bf16.msra.mxu0 0
      %399 = vmatpush.bf16.msra.mxu0 0
      %400 = vmatpush.bf16.msra.mxu0 0
      %401 = vmatpush.bf16.msra.mxu0 0
      %402 = vmatpush.bf16.msra.mxu0 %v378
      %403 = vmatmul.bf16.gmra.mxu0 %v374
      %v404 = vpop.f32.mrf.mxu0
      %v405 = vadd.f32 %v371, %v404
      %v406 = vpop.f32.mrf.mxu0
      %407 = vdwg.mxu0
      %408 = vmatpush.bf16.msra.mxu0 0
      %409 = vmatpush.bf16.msra.mxu0 0
      %410 = vmatpush.bf16.msra.mxu0 0
      %411 = vmatpush.bf16.msra.mxu0 0
      %412 = vmatpush.bf16.msra.mxu0 0
      %413 = vmatpush.bf16.msra.mxu0 0
      %414 = vmatpush.bf16.msra.mxu0 0
      %415 = vmatpush.bf16.msra.mxu0 %v380
      %416 = vmatmul.bf16.gmra.mxu0 %v374
      %v417 = vpop.f32.mrf.mxu0
      %v418 = vadd.f32 %v371, %v417
      %v419 = vpop.f32.mrf.mxu0
      %420 = vdwg.mxu0
      %v421 = vmax.f32 %v392, 0.0
      %v422 = vmax.f32 %v405, 0.0
      %v423 = vmax.f32 %v418, 0.0
      %s424 = scalar_lea.vmem %s170, 48
      %425 = vst [vmem:[%s424] sm:$0xff] %v421
      %426 = vst [vmem:[%s424 + $0x8] sm:$0xff] %v422
      %427 = vst.msk [vmem:[%s424 + $0x10] sm:$0xff] %vm240, %v423
      %v428 = vld [vmem:[%s165] sm:$0x3f]
      %430 = vst [vmem:[#allocation1] ss:$4 sm:$0xff] %v428
      %v431 = vld.sshfl [vmem:[#allocation1] sm:$0xff pattern:$0x73625140]
      %v432 = vld.sshfl [vmem:[#allocation1 + $0x8] sm:$0xff pattern:$0x73625140]
      %v433 = vld.sshfl [vmem:[#allocation1 + $0x10] sm:$0xff pattern:$0x73625140]
      %s434 = scalar_lea.vmem [#allocation1], 1
      %435 = vst [vmem:[%s434] ss:$4 sm:$0xff] %v428
      %v436 = vld.sshfl [vmem:[#allocation1] sm:$0xff pattern:$0x73625140]
      %v438 = vld.sshfl [vmem:[#allocation1 + $0x8] sm:$0xff pattern:$0x73625140]
      %v440 = vld.sshfl [vmem:[#allocation1 + $0x10] sm:$0xff pattern:$0x73625140]
      %442 = vrot.lane.b32.xlu0 %v436, 127
      %v443 = vpop.permute.xlu0 %442
      %444 = vrot.lane.b32.xlu0 %v438, 127
      %v445 = vpop.permute.xlu0 %444
      %446 = vrot.lane.b32.xlu0 %v440, 127
      %v447 = vpop.permute.xlu0 %446
      %v448 = vsel %vm262, %v443, %v445
      %v449 = vsel %vm262, %v445, %v447
      %s450 = scalar_lea.vmem [#allocation1], 2
      %451 = vst [vmem:[%s450] ss:$4 sm:$0xff] %v428
      %v452 = vld.sshfl [vmem:[#allocation1] sm:$0xff pattern:$0x73625140]
      %v454 = vld.sshfl [vmem:[#allocation1 + $0x8] sm:$0xff pattern:$0x73625140]
      %v456 = vld.sshfl [vmem:[#allocation1 + $0x10] sm:$0xff pattern:$0x73625140]
      %458 = vrot.lane.b32.xlu0 %v452, 111
      %v459 = vpop.permute.xlu0 %458
      %460 = vrot.lane.b32.xlu0 %v454, 111
      %v461 = vpop.permute.xlu0 %460
      %462 = vrot.lane.b32.xlu0 %v456, 111
      %v463 = vpop.permute.xlu0 %462
      %v464 = vsel %vm356, %v459, %v461
      %v465 = vsel %vm356, %v461, %v463
      %s466 = scalar_lea.vmem [#allocation1], 3
      %467 = vst [vmem:[%s466] ss:$4 sm:$0xff] %v428
      %v468 = vld.sshfl [vmem:[#allocation1] sm:$0xff pattern:$0x73625140]
      %v470 = vld.sshfl [vmem:[#allocation1 + $0x8] sm:$0xff pattern:$0x73625140]
      %v472 = vld.sshfl [vmem:[#allocation1 + $0x10] sm:$0xff pattern:$0x73625140]
      %474 = vrot.lane.b32.xlu0 %v468, 110
      %v475 = vpop.permute.xlu0 %474
      %476 = vrot.lane.b32.xlu0 %v470, 110
      %v477 = vpop.permute.xlu0 %476
      %478 = vrot.lane.b32.xlu0 %v472, 110
      %v479 = vpop.permute.xlu0 %478
      %vm480 = vcmask 900096
      %v481 = vsel %vm480, %v475, %v477
      %v482 = vsel %vm480, %v477, %v479
      %v484 = vsel %vm189, %v431, %v448
      %v486 = vsel %vm189, %v432, %v449
      %v488 = vsel %vm189, %v433, %v447
      %v490 = vsel %vm283, %v484, %v464
      %v492 = vsel %vm283, %v486, %v465
      %v494 = vsel %vm283, %v488, %v463
      %vm495 = vcmask 1045504
      %v497 = vsel %vm495, %v490, %v481
      %v500 = vsel %vm495, %v492, %v482
      %v503 = vsel %vm495, %v494, %v479
      %s505 = scalar_lea.vmem %s1, 12
      %v506 = vld [vmem:[%s505] sm:$0xf]
      %v507 = vld [vmem:[%s2] sm:$0xff]
      %509 = vset.pattern.permute.xlu0 0
      %510 = vperm.xlu0 %509, %v507
      %v511 = vpop.permute.xlu0 %510
      %v514 = vsel %vm240, %v506, 0
      %516 = vmatpush.bf16.msra.mxu0 0
      %517 = vmatpush.bf16.msra.mxu0 0
      %518 = vmatpush.bf16.msra.mxu0 0
      %519 = vmatpush.bf16.msra.mxu0 0
      %520 = vmatpush.bf16.msra.mxu0 0
      %521 = vmatpush.bf16.msra.mxu0 0
      %522 = vmatpush.bf16.msra.mxu0 0
      %523 = vmatpush.bf16.msra.mxu0 %v497
      %524 = vmatmul.bf16.gmra.mxu0 %v514
      %v525 = vpop.f32.mrf.mxu0
      %v526 = vadd.f32 %v511, %v525
      %v527 = vpop.f32.mrf.mxu0
      %528 = vdwg.mxu0
      %529 = vmatpush.bf16.msra.mxu0 0
      %530 = vmatpush.bf16.msra.mxu0 0
      %531 = vmatpush.bf16.msra.mxu0 0
      %532 = vmatpush.bf16.msra.mxu0 0
      %533 = vmatpush.bf16.msra.mxu0 0
      %534 = vmatpush.bf16.msra.mxu0 0
      %535 = vmatpush.bf16.msra.mxu0 0
      %536 = vmatpush.bf16.msra.mxu0 %v500
      %537 = vmatmul.bf16.gmra.mxu0 %v514
      %v538 = vpop.f32.mrf.mxu0
      %v539 = vadd.f32 %v511, %v538
      %v540 = vpop.f32.mrf.mxu0
      %541 = vdwg.mxu0
      %542 = vmatpush.bf16.msra.mxu0 0
      %543 = vmatpush.bf16.msra.mxu0 0
      %544 = vmatpush.bf16.msra.mxu0 0
      %545 = vmatpush.bf16.msra.mxu0 0
      %546 = vmatpush.bf16.msra.mxu0 0
      %547 = vmatpush.bf16.msra.mxu0 0
      %548 = vmatpush.bf16.msra.mxu0 0
      %549 = vmatpush.bf16.msra.mxu0 %v503
      %550 = vmatmul.bf16.gmra.mxu0 %v514
      %v551 = vpop.f32.mrf.mxu0
      %v552 = vadd.f32 %v511, %v551
      %v553 = vpop.f32.mrf.mxu0
      %554 = vdwg.mxu0
      %v555 = vmax.f32 %v526, 0.0
      %v556 = vmax.f32 %v539, 0.0
      %v557 = vmax.f32 %v552, 0.0
      %s558 = scalar_lea.vmem %s170, 72
      %559 = vst [vmem:[%s558] sm:$0xff] %v555
      %560 = vst [vmem:[%s558 + $0x8] sm:$0xff] %v556
      %561 = vst.msk [vmem:[%s558 + $0x10] sm:$0xff] %vm240, %v557
      %p562 = scmp.lt.s32.totalorder %s14, 1
      %s563 = scalar_select %p562, %s14, 1
      %s564 = smul.addr %s563, 12
      %s565 = smul.addr %s564, 8
      %s566 = scalar_lea.vmem %s3, %s565
      // Predicated region
      $region33: #{deconv_layer_forward.1} parent=31 // pred_check
        %p567 = pneg %p100
      $region34: #{deconv_layer_forward.1} parent=31 // pred_check_branch
        %569 = sbr.rel (%p567) target = $region36
      $region35: #{deconv_layer_forward.1} parent=31 // pred_region
        _
      $region36: #{deconv_layer_forward.1} parent=31 // pred_fallthru
        _
    $region32: #{deconv_layer_forward.1} parent=5 // pred_fallthru
      _
    %p570 = scmp.le.s32.totalorder 2, %s9
    // Predicated region
    $region37: #{deconv_layer_forward.1} parent=5 // pred_check
      %p571 = pneg %p570
    $region38: #{deconv_layer_forward.1} parent=5 // pred_check_branch
      %573 = sbr.rel (%p571) target = $region40
    $region39: #{deconv_layer_forward.1} parent=5 // pred_region
      %s574 = ssub.s32 %s9, 2
      // Predicated region
      $region41: #{deconv_layer_forward.1} parent=39 // pred_check
        %p575 = pneg %p106
      $region42: #{deconv_layer_forward.1} parent=39 // pred_check_branch
        %577 = sbr.rel (%p575) target = $region44
      $region43: #{deconv_layer_forward.1} parent=39 // pred_region
        %p578 = scmp.lt.s32.totalorder %s15, 1
        %s579 = scalar_select %p578, %s15, 1
        %s580 = smul.addr %s579, 12
        %s581 = smul.addr %s580, 8
        %s582 = scalar_lea.vmem %s3, %s581
      $region44: #{deconv_layer_forward.1} parent=39 // pred_fallthru
        _
    $region40: #{deconv_layer_forward.1} parent=5 // pred_fallthru
      _
  $region6: #{deconv_layer_forward.1} parent=0 // loop_footer
    %s13 = sadd.s32 1, %s9
  $region7: #{deconv_layer_forward.1} parent=0 // loop_footer_branch
    %8 = sbr.rel target = $region3
  $region8: #{deconv_layer_forward.1} parent=0 // loop_exit
    _

</llo_original>
